<compile_context>
chip_gen: v7x
topology: tpu7x:2x2x1
jax: 0.10.0
libtpu: 0.0.40
codegen_flags: <defaults>
</compile_context>

<pallas_src>
import jax
import jax.numpy as jnp
from jax.experimental import pallas as pl
from jax.experimental.pallas import tpu as pltpu


def _round_up(x, m):
    return ((x + m - 1) // m) * m


def _choose_hw_tile(C, HW, itemsize):
    # ~4 MiB per streamed block: few, large tiles amortize the ~0.35us/step
    # overhead while in+out double-buffering stays well under the VMEM limit.
    budget = 4 * 1024 * 1024
    lanes = budget // max(1, C * itemsize)
    lanes = max(128, min(8192, (lanes // 128) * 128))
    return min(lanes, _round_up(HW, 128))


def _fused_fits(C, HW, itemsize, vmem_limit_bytes):
    blk = C * HW * itemsize
    blk_f32 = C * HW * 4
    # 2x double-buffered input + 2x output + f32 temporaries + (C,C) weight.
    est = 4 * blk + 2 * blk_f32 + 2 * C * C * 4 + (64 << 10)
    cap = min(vmem_limit_bytes, 48 * 1024 * 1024) - (4 << 20)
    return est <= cap


# -----------------------------------------------------------------------------
# Fused single-pass kernel: pool + 1x1 conv + sigmoid + rescale, one image
# resident per grid step.  x is read from HBM once and written once.
# -----------------------------------------------------------------------------
def _fused_kernel(x_ref, w_ref, b_ref, o_ref):
    # x_ref/o_ref: (1, C, HW)   w_ref: (C, C) = W / HW   b_ref: (C, 1)
    x = x_ref[...]
    sums = jnp.sum(x.astype(jnp.float32), axis=-1, keepdims=True)        # (1, C, 1)
    logits = jnp.dot(w_ref[...], sums[0],
                     preferred_element_type=jnp.float32) + b_ref[...]    # (C, 1)
    attn = jax.nn.sigmoid(logits)                                        # (C, 1)
    o_ref[...] = (x * attn[None].astype(x.dtype)).astype(o_ref.dtype)


# -----------------------------------------------------------------------------
# Pass 1 (fallback): tiled global-average-pool (as a masked sum; 1/HW folded
# into the weight) + column-oriented 1x1 conv + sigmoid  ->  attn (B, C, 1)
# -----------------------------------------------------------------------------
def _make_pool_fc_sigmoid_kernel(HW, hw_tile):
    needs_mask = (HW % hw_tile) != 0

    def kernel(x_ref, w_ref, b_ref, attn_ref, acc_ref):
        # x_ref: (1, C, hw_tile)  w_ref: (C, C) = W / HW  b_ref: (C, 1)
        # attn_ref: (1, C, 1) output (resident across the HW-tile axis)
        # acc_ref:  (1, C, 1) f32 channel-sum accumulator scratch
        t = pl.program_id(1)

        @pl.when(t == 0)
        def _():
            acc_ref[...] = jnp.zeros_like(acc_ref)

        x = x_ref[...].astype(jnp.float32)
        if needs_mask:
            # Last partial tile: out-of-bounds lanes hold undefined data; zero
            # them before the (sum-neutral) reduction.
            lane = jax.lax.broadcasted_iota(jnp.int32, x.shape, 2)
            x = jnp.where(lane < (HW - t * hw_tile), x, 0.0)
        acc_ref[...] += jnp.sum(x, axis=-1, keepdims=True)                # (1, C, 1)

        @pl.when(t == pl.num_programs(1) - 1)
        def _():
            # Column-oriented 1x1 conv: (C,C) @ (C,1) -> (C,1).  1/HW already
            # folded into w_ref; bias added directly.  Runs once per image.
            logits = jnp.dot(w_ref[...], acc_ref[0],
                             preferred_element_type=jnp.float32) + b_ref[...]
            attn_ref[0] = jax.nn.sigmoid(logits).astype(attn_ref.dtype)

    return kernel


# -----------------------------------------------------------------------------
# Pass 2 (fallback): tiled elementwise rescale  out = x * attn  (broadcast HW).
# No mask needed for the last partial tile: OOB writes are dropped.
# -----------------------------------------------------------------------------
def _rescale_kernel(x_ref, attn_ref, o_ref):
    # x_ref/o_ref: (1, C, hw_tile)   attn_ref: (1, C, 1) f32
    o_ref[...] = (x_ref[...] * attn_ref[...].astype(x_ref.dtype)).astype(o_ref.dtype)


def channel_attention(x, weight, bias, *, vmem_limit_bytes=48 * 1024 * 1024,
                      force_two_pass=False, hw_tile=None):
    """x: (B, C, H, W); weight: (C_out, C_in) squeezed 1x1-conv weight; bias: (C,)."""
    B, C, H, W = x.shape
    HW = H * W
    itemsize = jnp.dtype(x.dtype).itemsize

    x_flat = x.reshape(B, C, HW)
    # Fold the 1/HW of the mean into the static weight; bias as a column.
    w_scaled = weight.astype(jnp.float32) / float(HW)                     # (C, C)
    b_col = bias.astype(jnp.float32).reshape(C, 1)                        # (C, 1)

    # --- Fused fast path: one image per grid step, x streamed once ----------
    if (not force_two_pass) and _fused_fits(C, HW, itemsize, vmem_limit_bytes):
        out_flat = pl.pallas_call(
            _fused_kernel,
            out_shape=jax.ShapeDtypeStruct((B, C, HW), x.dtype),
            grid_spec=pltpu.PrefetchScalarGridSpec(
                num_scalar_prefetch=0,
                grid=(B,),
                in_specs=[
                    pl.BlockSpec((1, C, HW), lambda b: (b, 0, 0)),
                    pl.BlockSpec((C, C), lambda b: (0, 0)),
                    pl.BlockSpec((C, 1), lambda b: (0, 0)),
                ],
                out_specs=pl.BlockSpec((1, C, HW), lambda b: (b, 0, 0)),
            ),
            compiler_params=pltpu.CompilerParams(
                dimension_semantics=("parallel",),
                vmem_limit_bytes=vmem_limit_bytes),
        )(x_flat, w_scaled, b_col)
        return out_flat.reshape(B, C, H, W)

    # --- Two-pass streaming fallback for feature maps too large for VMEM ----
    if hw_tile is None:
        hw_tile = _choose_hw_tile(C, HW, itemsize)
    assert hw_tile % 128 == 0, "hw_tile must be a multiple of 128"
    n_tiles = pl.cdiv(HW, hw_tile)

    # Pass 1: tiled channel-sum reduction + 1x1 conv + sigmoid -> attn (B,C,1).
    attn = pl.pallas_call(
        _make_pool_fc_sigmoid_kernel(HW, hw_tile),
        out_shape=jax.ShapeDtypeStruct((B, C, 1), jnp.float32),
        grid_spec=pltpu.PrefetchScalarGridSpec(
            num_scalar_prefetch=0,
            grid=(B, n_tiles),
            in_specs=[
                pl.BlockSpec((1, C, hw_tile), lambda b, t: (b, 0, t)),
                pl.BlockSpec((C, C), lambda b, t: (0, 0)),     # stays resident
                pl.BlockSpec((C, 1), lambda b, t: (0, 0)),     # stays resident
            ],
            out_specs=pl.BlockSpec((1, C, 1), lambda b, t: (b, 0, 0)),
            scratch_shapes=[pltpu.VMEM((1, C, 1), jnp.float32)],
        ),
        compiler_params=pltpu.CompilerParams(
            dimension_semantics=("parallel", "arbitrary"),
            vmem_limit_bytes=vmem_limit_bytes),
    )(x_flat, w_scaled, b_col)

    # Pass 2: fully-parallel tiled rescale (good for v7x's 2 TensorCores).
    out_flat = pl.pallas_call(
        _rescale_kernel,
        out_shape=jax.ShapeDtypeStruct((B, C, HW), x.dtype),
        grid_spec=pltpu.PrefetchScalarGridSpec(
            num_scalar_prefetch=0,
            grid=(B, n_tiles),
            in_specs=[
                pl.BlockSpec((1, C, hw_tile), lambda b, t: (b, 0, t)),
                pl.BlockSpec((1, C, 1), lambda b, t: (b, 0, 0)),
            ],
            out_specs=pl.BlockSpec((1, C, hw_tile), lambda b, t: (b, 0, t)),
        ),
        compiler_params=pltpu.CompilerParams(
            dimension_semantics=("parallel", "parallel"),
            vmem_limit_bytes=vmem_limit_bytes),
    )(x_flat, attn)

    return out_flat.reshape(B, C, H, W)


def _reference(x, weight, bias):
    pooled = jnp.mean(x, axis=(2, 3), keepdims=True)                      # (B, C, 1, 1)
    logits = jnp.einsum("oi,bihw->bohw", weight, pooled) + bias[None, :, None, None]
    return x * jax.nn.sigmoid(logits)


if __name__ == "__main__":
    key = jax.random.PRNGKey(0)
    kx, kw, kb, kx2 = jax.random.split(key, 4)

    # Small shapes consistent with the module.
    B, C, H, W = 2, 4, 16, 16
    x = jax.random.normal(kx, (B, C, H, W), dtype=jnp.float32)
    # 1x1 conv params: weight (C_out, C_in) (trailing 1x1 dims squeezed), bias (C,)
    weight = jax.random.normal(kw, (C, C), dtype=jnp.float32) * 0.1
    bias = jax.random.normal(kb, (C,), dtype=jnp.float32) * 0.1

    # 1) Fused single-pass path (whole image fits in VMEM).
    out = jax.block_until_ready(channel_attention(x, weight, bias))
    ref = _reference(x, weight, bias)
    assert out.shape == (B, C, H, W)
    assert jnp.allclose(out, ref, atol=1e-5, rtol=1e-5), "fused path mismatch"

    # 2) Two-pass streaming path with a non-128-multiple HW (exercises the
    #    in-kernel masking of the last partial tile and multi-tile accumulation).
    H2, W2 = 18, 19
    x2 = jax.random.normal(kx2, (B, C, H2, W2), dtype=jnp.float32)
    out2 = jax.block_until_ready(
        channel_attention(x2, weight, bias, force_two_pass=True, hw_tile=128))
    ref2 = _reference(x2, weight, bias)
    assert out2.shape == (B, C, H2, W2)
    assert jnp.allclose(out2, ref2, atol=1e-5, rtol=1e-5), "two-pass path mismatch"

    print("KERNEL_OK")
</pallas_src>

<mosaic_0001>
module attributes {stable_mosaic.version = 11 : i64} {
  func.func @_fused_kernel(%arg0: i32, %arg1: memref<1x4x256xf32, #tpu.memory_space<vmem>>, %arg2: memref<4x4xf32, #tpu.memory_space<vmem>>, %arg3: memref<4x1xf32, #tpu.memory_space<vmem>>, %arg4: memref<1x4x256xf32, #tpu.memory_space<vmem>>) attributes {dimension_semantics = [#tpu.dimension_semantics<parallel>], iteration_bounds = array<i64: 2>, scalar_prefetch = 0 : i64, scratch_operands = 0 : i64, tpu.core_type = #tpu.core_type<tc>, window_params = [{transform_indices = @transform_0, window_bounds = array<i64: 1, 4, 256>}, {pipeline_mode = #tpu.pipeline_mode<synchronous>, transform_indices = @transform_1, window_bounds = array<i64: 4, 4>}, {pipeline_mode = #tpu.pipeline_mode<synchronous>, transform_indices = @transform_2, window_bounds = array<i64: 4, 1>}, {transform_indices = @transform_3, window_bounds = array<i64: 1, 4, 256>}]} {
    %c0 = arith.constant 0 : index
    %c0_0 = arith.constant 0 : index
    %c0_1 = arith.constant 0 : index
    %0 = vector.load %arg1[%c0, %c0_0, %c0_1] : memref<1x4x256xf32, #tpu.memory_space<vmem>>, vector<1x4x256xf32>
    %cst = arith.constant dense<0.000000e+00> : vector<1x4xf32>
    %1 = vector.multi_reduction <add>, %0, %cst [2] : vector<1x4x256xf32> to vector<1x4xf32>
    %2 = vector.shape_cast %1 : vector<1x4xf32> to vector<1x4x1xf32>
    %c0_2 = arith.constant 0 : index
    %c0_3 = arith.constant 0 : index
    %3 = vector.load %arg2[%c0_2, %c0_3] : memref<4x4xf32, #tpu.memory_space<vmem>>, vector<4x4xf32>
    %4 = vector.shape_cast %2 : vector<1x4x1xf32> to vector<4x1xf32>
    %cst_4 = arith.constant dense<0.000000e+00> : vector<4x1xf32>
    %5 = tpu.matmul %3, %4, %cst_4 {dimension_numbers = #tpu.dot_dimension_numbers<[1], [0], [0], [1], [0, 0, 1, 1], [], []>} : vector<4x4xf32>, vector<4x1xf32>, vector<4x1xf32> -> vector<4x1xf32>
    %c0_5 = arith.constant 0 : index
    %c0_6 = arith.constant 0 : index
    %6 = vector.load %arg3[%c0_5, %c0_6] : memref<4x1xf32, #tpu.memory_space<vmem>>, vector<4x1xf32>
    %7 = arith.addf %5, %6 : vector<4x1xf32>
    %8 = arith.negf %7 : vector<4x1xf32>
    %9 = math.exp %8 : vector<4x1xf32>
    %cst_7 = arith.constant 1.000000e+00 : f32
    %10 = vector.broadcast %cst_7 : f32 to vector<4x1xf32>
    %11 = arith.addf %10, %9 : vector<4x1xf32>
    %12 = arith.divf %10, %11 : vector<4x1xf32>
    %13 = vector.shape_cast %12 : vector<4x1xf32> to vector<1x4x1xf32>
    %14 = vector.broadcast %13 : vector<1x4x1xf32> to vector<1x4x256xf32>
    %15 = arith.mulf %0, %14 : vector<1x4x256xf32>
    %c0_8 = arith.constant 0 : index
    %c0_9 = arith.constant 0 : index
    %c0_10 = arith.constant 0 : index
    %16 = vector.load %arg4[%c0_8, %c0_9, %c0_10] : memref<1x4x256xf32, #tpu.memory_space<vmem>>, vector<1x4x256xf32>
    tpu.vector_store %arg4[%c0_8, %c0_9, %c0_10], %15 {strides = array<i32>} : memref<1x4x256xf32, #tpu.memory_space<vmem>>, vector<1x4x256xf32>,
    return
  }
  func.func @transform_0(%arg0: i32) -> (i32, i32, i32) {
    %c0_i32 = arith.constant 0 : i32
    %c0_i32_0 = arith.constant 0 : i32
    %c0_i32_1 = arith.constant 0 : i32
    return %arg0, %c0_i32, %c0_i32_0 : i32, i32, i32
  }
  func.func @transform_1(%arg0: i32) -> (i32, i32) {
    %c0_i32 = arith.constant 0 : i32
    %c0_i32_0 = arith.constant 0 : i32
    %c0_i32_1 = arith.constant 0 : i32
    return %c0_i32, %c0_i32_0 : i32, i32
  }
  func.func @transform_2(%arg0: i32) -> (i32, i32) {
    %c0_i32 = arith.constant 0 : i32
    %c0_i32_0 = arith.constant 0 : i32
    %c0_i32_1 = arith.constant 0 : i32
    return %c0_i32, %c0_i32_0 : i32, i32
  }
  func.func @transform_3(%arg0: i32) -> (i32, i32, i32) {
    %c0_i32 = arith.constant 0 : i32
    %c0_i32_0 = arith.constant 0 : i32
    %c0_i32_1 = arith.constant 0 : i32
    return %arg0, %c0_i32, %c0_i32_0 : i32, i32, i32
  }
}

</mosaic_0001>

<llo_original>
// kernel: tpu_custom_call.1
$region0: #{tpu_custom_call.1}
  #allocation0 [shape = 'u32[]', space=smem, size = 0x4, offset = 0x4, fixed_abs, tag = 'smem constant byte address 0x4 - core index']
  #allocation1 [shape = 'u32[144,128]{1,0:T(1,128)}', space=vmem, size = 0x12000, scoped, tag = 'internal scratch']
  %s0 = inlined_call_operand.hbm [shape: f32[2,4,256], index: 0, kind: input, shape index: {}]
  %s1 = inlined_call_operand.vmem [shape: f32[4,4], index: 1, kind: input, shape index: {}]
  %s2 = inlined_call_operand.vmem [shape: f32[4,1], index: 2, kind: input, shape index: {}]
  %s3 = inlined_call_operand.hbm [shape: f32[2,4,256], index: 3, kind: output, shape index: {}]
  %s4 = sld [smem:[#allocation0]]
  $region49: #{tpu_custom_call.1} parent=0
    _
  %s6 = ssub.s32 1, %s4
  %s7 = scalar_select 0, %s6, %s4
  $region1: #{tpu_custom_call.1} parent=0
    #allocation2 [shape = 'u8[8192]{0}', space=vmem, size = 0x2000, scoped, tag = 'input window, operand 0']
    #allocation3 [shape = 's32[2]{0}', space=sflag, size = 0x8, scoped, tag = 'scoped memory for tpu_custom_call.1']
    #allocation4 [shape = 's32[2]{0}', space=sflag, size = 0x8, scoped, tag = 'scoped memory for tpu_custom_call.1']
    #allocation5 [shape = 'u8[8192]{0}', space=vmem, size = 0x2000, scoped, tag = 'output window, operand 0']
    %8 = vsyncpa [#allocation3], 0
    %s9 = scalar_lea.sflag [#allocation3], 1
    %10 = vsyncpa %s9, 0
    %11 = vsyncpa [#allocation4], 0
    %s12 = scalar_lea.sflag [#allocation4], 1
    %13 = vsyncpa %s12, 0
    loop: start=0, step=1, limit=4
    $region2: #{tpu_custom_call.1} parent=1 // loop_pre_header
      _
    $region3: #{tpu_custom_call.1} parent=1 // loop_header
      %s15 = sphi 0, %s19
      %p16 = scmp.ge.s32.totalorder %s15, 4
      %s25 = sphi 0, %s27
      %s28 = sphi 0, %s25
      %s29 = sphi 0, %s28
      %s45 = sphi 0, %s29
      %s49 = sphi 0, %s49
      %s51 = sphi 0, %s49
      %s52 = sphi 0, %s51
      %s66 = sphi 0, %s52
      %s70 = sphi 0, %s70
      %s72 = sphi 0, %s70
      %s73 = sphi 0, %s72
      %s87 = sphi 0, %s73
      %s93 = sphi 0, %s95
      %s96 = sphi 0, %s93
      %s97 = sphi 0, %s96
      %s113 = sphi 0, %s97
    $region4: #{tpu_custom_call.1} parent=1 // loop_header_branch
      %18 = sbr.rel (%p16) target = $region8
    $region5: #{tpu_custom_call.1} parent=1 // loop_body
      %s20 = ssub.s32 %s15, 1
      %s21 = ssub.s32 %s15, 2
      %s22 = sadd.s32 %s15, 1
      %s23 = ssub.s32 %s15, %s22
      %p24 = scmp.eq.s32.totalorder %s23, 0
      %s26 = sadd.s32 %s25, 1
      %s27 = scalar_select %p24, %s25, %s26
      %p30 = pneg %p24
      %p31 = scmp.eq.s32.totalorder %s15, 1
      %p32 = por %p30, %p31
      %p33 = scmp.ne.s32.totalorder %s25, %s28
      %p34 = scmp.eq.s32.totalorder %s15, 0
      %p35 = por %p33, %p34
      %p36 = scmp.ne.s32.totalorder %s25, %s28
      %p37 = scmp.eq.s32.totalorder %s20, 1
      %p38 = por %p36, %p37
      %p39 = scmp.ne.s32.totalorder %s28, %s29
      %p40 = scmp.eq.s32.totalorder %s20, 0
      %p41 = por %p39, %p40
      %p42 = scmp.ne.s32.totalorder %s28, %s29
      %p43 = scmp.eq.s32.totalorder %s21, 1
      %p44 = por %p42, %p43
      %p46 = scmp.ne.s32.totalorder %s29, %s45
      %p47 = scmp.eq.s32.totalorder %s21, 0
      %p48 = por %p46, %p47
      %s50 = sadd.s32 %s49, 1
      %p53 = scmp.eq.s32.totalorder %s15, 1
      %p54 = scmp.ne.s32.totalorder %s49, %s51
      %p55 = scmp.eq.s32.totalorder %s15, 0
      %p56 = por %p54, %p55
      %p57 = scmp.ne.s32.totalorder %s49, %s51
      %p58 = scmp.eq.s32.totalorder %s20, 1
      %p59 = por %p57, %p58
      %p60 = scmp.ne.s32.totalorder %s51, %s52
      %p61 = scmp.eq.s32.totalorder %s20, 0
      %p62 = por %p60, %p61
      %p63 = scmp.ne.s32.totalorder %s51, %s52
      %p64 = scmp.eq.s32.totalorder %s21, 1
      %p65 = por %p63, %p64
      %p67 = scmp.ne.s32.totalorder %s52, %s66
      %p68 = scmp.eq.s32.totalorder %s21, 0
      %p69 = por %p67, %p68
      %s71 = sadd.s32 %s70, 1
      %p74 = scmp.eq.s32.totalorder %s15, 1
      %p75 = scmp.ne.s32.totalorder %s70, %s72
      %p76 = scmp.eq.s32.totalorder %s15, 0
      %p77 = por %p75, %p76
      %p78 = scmp.ne.s32.totalorder %s70, %s72
      %p79 = scmp.eq.s32.totalorder %s20, 1
      %p80 = por %p78, %p79
      %p81 = scmp.ne.s32.totalorder %s72, %s73
      %p82 = scmp.eq.s32.totalorder %s20, 0
      %p83 = por %p81, %p82
      %p84 = scmp.ne.s32.totalorder %s72, %s73
      %p85 = scmp.eq.s32.totalorder %s21, 1
      %p86 = por %p84, %p85
      %p88 = scmp.ne.s32.totalorder %s73, %s87
      %p89 = scmp.eq.s32.totalorder %s21, 0
      %p90 = por %p88, %p89
      %s91 = ssub.s32 %s15, %s22
      %p92 = scmp.eq.s32.totalorder %s91, 0
      %s94 = sadd.s32 %s93, 1
      %s95 = scalar_select %p92, %s93, %s94
      %p98 = pneg %p92
      %p99 = scmp.eq.s32.totalorder %s15, 1
      %p100 = por %p98, %p99
      %p101 = scmp.ne.s32.totalorder %s93, %s96
      %p102 = scmp.eq.s32.totalorder %s15, 0
      %p103 = por %p101, %p102
      %p104 = scmp.ne.s32.totalorder %s93, %s96
      %p105 = scmp.eq.s32.totalorder %s20, 1
      %p106 = por %p104, %p105
      %p107 = scmp.ne.s32.totalorder %s96, %s97
      %p108 = scmp.eq.s32.totalorder %s20, 0
      %p109 = por %p107, %p108
      %p110 = scmp.ne.s32.totalorder %s96, %s97
      %p111 = scmp.eq.s32.totalorder %s21, 1
      %p112 = por %p110, %p111
      %p114 = scmp.ne.s32.totalorder %s97, %s113
      %p115 = scmp.eq.s32.totalorder %s21, 0
      %p116 = por %p114, %p115
      %p117 = scmp.le.s32.totalorder 1, %s15
      %p118 = scmp.lt.s32.totalorder %s15, 3
      %p119 = pnand %p117, %p118
      %p120 = pneg %p119
      // Predicated region
      $region9: #{tpu_custom_call.1} parent=5 // pred_check
        _
      $region10: #{tpu_custom_call.1} parent=5 // pred_check_branch
        %122 = sbr.rel (%p119) target = $region12
      $region11: #{tpu_custom_call.1} parent=5 // pred_region
        %s123 = ssub.s32 %s15, 1
        // Predicated region
        $region13: #{tpu_custom_call.1} parent=11 // pred_check
          %p124 = pneg %p62
        $region14: #{tpu_custom_call.1} parent=11 // pred_check_branch
          %126 = sbr.rel (%p124) target = $region16
        $region15: #{tpu_custom_call.1} parent=11 // pred_region
          _
        $region16: #{tpu_custom_call.1} parent=11 // pred_fallthru
          _
        // Predicated region
        $region17: #{tpu_custom_call.1} parent=11 // pred_check
          %p127 = pneg %p83
        $region18: #{tpu_custom_call.1} parent=11 // pred_check_branch
          %129 = sbr.rel (%p127) target = $region20
        $region19: #{tpu_custom_call.1} parent=11 // pred_region
          _
        $region20: #{tpu_custom_call.1} parent=11 // pred_fallthru
          _
      $region12: #{tpu_custom_call.1} parent=5 // pred_fallthru
        _
      %p130 = scmp.lt.s32.totalorder %s15, 2
      // Predicated region
      $region21: #{tpu_custom_call.1} parent=5 // pred_check
        %p131 = pneg %p130
      $region22: #{tpu_custom_call.1} parent=5 // pred_check_branch
        %133 = sbr.rel (%p131) target = $region24
      $region23: #{tpu_custom_call.1} parent=5 // pred_region
        // Predicated region
        $region25: #{tpu_custom_call.1} parent=23 // pred_check
          %p134 = pneg %p35
        $region26: #{tpu_custom_call.1} parent=23 // pred_check_branch
          %136 = sbr.rel (%p134) target = $region28
        $region27: #{tpu_custom_call.1} parent=23 // pred_region
          %s137 = sand.u32 %s25, 1
          %s138 = scalar_lea.sflag [#allocation3], %s137
          %s139 = sand.u32 %s25, 1
          %s140 = smul.addr %s139, 8
          %s141 = scalar_lea.vmem [#allocation2], %s140
          %s143 = ssub.s32 128, 128
          %144 = vsyncadd %s138, %s143
          %s145 = smul.addr %s15, 2
          %s146 = smul.addr %s145, 64
          %s147 = scalar_lea.hbm %s0, %s146
          %s149 = sshll.u32 %s141, 4
          %s150 = int_to_ptr.vmem [resolvable:$true] %s149
          %152 = dma.hbm_to_vmem [thread:$0]  %s147, 128, %s150, %s138
        $region28: #{tpu_custom_call.1} parent=23 // pred_fallthru
          _
      $region24: #{tpu_custom_call.1} parent=5 // pred_fallthru
        _
      %p153 = scmp.le.s32.totalorder 1, %s15
      %p154 = scmp.lt.s32.totalorder %s15, 3
      %p155 = pnand %p153, %p154
      %p156 = pneg %p155
      // Predicated region
      $region29: #{tpu_custom_call.1} parent=5 // pred_check
        _
      $region30: #{tpu_custom_call.1} parent=5 // pred_check_branch
        %158 = sbr.rel (%p155) target = $region32
      $region31: #{tpu_custom_call.1} parent=5 // pred_region
        %s159 = ssub.s32 %s15, 1
        %s160 = sand.u32 %s28, 1
        %s161 = scalar_lea.sflag [#allocation3], %s160
        %s162 = sand.u32 %s28, 1
        %s163 = smul.addr %s162, 8
        %s164 = scalar_lea.vmem [#allocation2], %s163
        // Predicated region
        $region33: #{tpu_custom_call.1} parent=31 // pred_check
          %p165 = pneg %p41
        $region34: #{tpu_custom_call.1} parent=31 // pred_check_branch
          %167 = sbr.rel (%p165) target = $region36
        $region35: #{tpu_custom_call.1} parent=31 // pred_region
          %168 = dma.done %s161, 128
        $region36: #{tpu_custom_call.1} parent=31 // pred_fallthru
          _
        %s169 = sand.u32 %s28, 1
        %s170 = scalar_lea.sflag [#allocation3], %s169
        %s171 = sand.u32 %s28, 1
        %s172 = smul.addr %s171, 8
        %s173 = scalar_lea.vmem [#allocation2], %s172
        %p174 = pneg %p41
        %p175 = pneg %p38
        %p176 = pneg %p62
        %p177 = pneg %p59
        %p178 = pneg %p83
        %p179 = pneg %p80
        %p180 = pneg %p109
        %p181 = pneg %p106
        %s182 = sand.u32 %s96, 1
        %s183 = scalar_lea.sflag [#allocation4], %s182
        %s184 = sand.u32 %s96, 1
        %s185 = smul.addr %s184, 8
        %s186 = scalar_lea.vmem [#allocation5], %s185
        %v187 = vld [vmem:[%s164] sm:$0xff]
        %v189 = vcombine.high %v187, %v187
        %vm191 = vcmask 1043456
        %v192 = vsel %vm191, %v187, 0.0
        %v193 = vsel %vm191, %v189, 0.0
        %v194 = vadd.f32 %v192, %v193
        %195 = vadd.xlane.f32.xlu0 %v194
        %v196 = vpop.xlane.xlu0 %195
        %v197 = vld [vmem:[%s1] sm:$0xf]
        %v198 = vld [vmem:[%s2] sm:$0xf]
        %vm199 = vcmask 31744
        %v201 = vsel %vm199, %v197, 0
        %v204 = vsel %vm191, %v196, 0
        %206 = vmatprep.subr.mxu0 0.0
        %207 = vmatpush1.msra.mxu0 %v204
        %208 = vmatprep.subr.mxu0 0.0
        %209 = vmatpush1.msra.mxu0 0.0
        %210 = vmatprep.subr.mxu0 0.0
        %211 = vmatpush1.msra.mxu0 0.0
        %212 = vmatprep.subr.mxu0 0.0
        %213 = vmatpush1.msra.mxu0 0.0
        %214 = vmatprep.subr.mxu0 0.0
        %215 = vmatpush1.msra.mxu0 0.0
        %216 = vmatprep.subr.mxu0 0.0
        %217 = vmatpush1.msra.mxu0 0.0
        %218 = vmatprep.subr.mxu0 0.0
        %219 = vmatpush1.msra.mxu0 0.0
        %220 = vmatprep.subr.mxu0 0.0
        %221 = vmatpush1.msra.mxu0 0.0
        %222 = vmatprep.subr.mxu0 0.0
        %223 = vmatpush1.msra.mxu0 0.0
        %224 = vmatprep.subr.mxu0 0.0
        %225 = vmatpush1.msra.mxu0 0.0
        %226 = vmatprep.subr.mxu0 0.0
        %227 = vmatpush1.msra.mxu0 0.0
        %228 = vmatprep.subr.mxu0 0.0
        %229 = vmatpush1.msra.mxu0 0.0
        %230 = vmatprep.subr.mxu0 0.0
        %231 = vmatpush1.msra.mxu0 0.0
        %232 = vmatprep.subr.mxu0 0.0
        %233 = vmatpush1.msra.mxu0 0.0
        %234 = vmatprep.subr.mxu0 0.0
        %235 = vmatpush1.msra.mxu0 0.0
        %236 = vmatprep.subr.mxu0 0.0
        %237 = vmatpush1.msra.mxu0 0.0
        %238 = vmatprep.subr.mxu0 0.0
        %239 = vmatpush1.msra.mxu0 0.0
        %240 = vmatprep.subr.mxu0 0.0
        %241 = vmatpush1.msra.mxu0 0.0
        %242 = vmatprep.subr.mxu0 0.0
        %243 = vmatpush1.msra.mxu0 0.0
        %244 = vmatprep.subr.mxu0 0.0
        %245 = vmatpush1.msra.mxu0 0.0
        %246 = vmatprep.subr.mxu0 0.0
        %247 = vmatpush1.msra.mxu0 0.0
        %248 = vmatprep.subr.mxu0 0.0
        %249 = vmatpush1.msra.mxu0 0.0
        %250 = vmatprep.subr.mxu0 0.0
        %251 = vmatpush1.msra.mxu0 0.0
        %252 = vmatprep.subr.mxu0 0.0
        %253 = vmatpush1.msra.mxu0 0.0
        %254 = vmatprep.subr.mxu0 0.0
        %255 = vmatpush1.msra.mxu0 0.0
        %256 = vmatprep.subr.mxu0 0.0
        %257 = vmatpush1.msra.mxu0 0.0
        %258 = vmatprep.subr.mxu0 0.0
        %259 = vmatpush1.msra.mxu0 0.0
        %260 = vmatprep.subr.mxu0 0.0
        %261 = vmatpush1.msra.mxu0 0.0
        %262 = vmatprep.subr.mxu0 0.0
        %263 = vmatpush1.msra.mxu0 0.0
        %264 = vmatprep.subr.mxu0 0.0
        %265 = vmatpush1.msra.mxu0 0.0
        %266 = vmatprep.subr.mxu0 0.0
        %267 = vmatpush1.msra.mxu0 0.0
        %268 = vmatprep.subr.mxu0 0.0
        %269 = vmatpush1.msra.mxu0 0.0
        %270 = vmatprep.mubr.f32.mxu0 0.0
        %271 = vmatmul.mubr.f32.gmra.mrb[0].mxu0 %v201
        %v272 = vpop.f32.mrb[0].mxu0
        %v273 = vadd.f32 %v198, %v272
        %v274 = vpop.f32.mrb[0].mxu0
        %275 = vdwg.mxu0
        %v276 = vxor.u32 %v273, 2147483648
        %v277 = vmul.f32 %v276, 1.442695
        %v278 = vpow.pop %v277
        %v279 = vadd.f32 %v278, 1.0
        %v280 = vrcp.pop %v279
        %v281 = vmul.f32 1.0, %v280
        %283 = vset.pattern.permute.xlu0 0
        %284 = vperm.xlu0 %283, %v281
        %v285 = vpop.permute.xlu0 %284
        %v287 = vunpack.c.l.s4 839922192
        %v288 = vunpack.c.0.s8 %v287
        %v289 = vlaneseq
        %v290 = vshrl.u32 %v289, 7
        %v291 = vsub.s32 %v288, %v290
        %v292 = vrot.slane %v285, %v291
        %v294 = vmul.f32 %v187, %v292
        %295 = vst [vmem:[%s186] sm:$0xff] %v294
        %s296 = sand.u32 %s96, 1
        %s297 = scalar_lea.sflag [#allocation4], %s296
        %s298 = sand.u32 %s96, 1
        %s299 = smul.addr %s298, 8
        %s300 = scalar_lea.vmem [#allocation5], %s299
        // Predicated region
        $region37: #{tpu_custom_call.1} parent=31 // pred_check
          %p301 = pneg %p106
        $region38: #{tpu_custom_call.1} parent=31 // pred_check_branch
          %303 = sbr.rel (%p301) target = $region40
        $region39: #{tpu_custom_call.1} parent=31 // pred_region
          %s305 = ssub.s32 128, 128
          %306 = vsyncadd %s297, %s305
          %s307 = smul.addr %s20, 2
          %s308 = smul.addr %s307, 64
          %s309 = scalar_lea.hbm %s3, %s308
          %s311 = sshll.u32 %s300, 4
          %s312 = int_to_ptr.vmem [resolvable:$true] %s311
          %314 = dma.vmem_to_hbm [thread:$0]  %s312, 128, %s309, %s297
        $region40: #{tpu_custom_call.1} parent=31 // pred_fallthru
          _
      $region32: #{tpu_custom_call.1} parent=5 // pred_fallthru
        _
      %p315 = scmp.le.s32.totalorder 2, %s15
      // Predicated region
      $region41: #{tpu_custom_call.1} parent=5 // pred_check
        %p316 = pneg %p315
      $region42: #{tpu_custom_call.1} parent=5 // pred_check_branch
        %318 = sbr.rel (%p316) target = $region44
      $region43: #{tpu_custom_call.1} parent=5 // pred_region
        %s319 = ssub.s32 %s15, 2
        // Predicated region
        $region45: #{tpu_custom_call.1} parent=43 // pred_check
          %p320 = pneg %p112
        $region46: #{tpu_custom_call.1} parent=43 // pred_check_branch
          %322 = sbr.rel (%p320) target = $region48
        $region47: #{tpu_custom_call.1} parent=43 // pred_region
          %s323 = sand.u32 %s97, 1
          %s324 = scalar_lea.sflag [#allocation4], %s323
          %s325 = sand.u32 %s97, 1
          %s326 = smul.addr %s325, 8
          %s327 = scalar_lea.vmem [#allocation5], %s326
          %328 = dma.done %s324, 128
        $region48: #{tpu_custom_call.1} parent=43 // pred_fallthru
          _
      $region44: #{tpu_custom_call.1} parent=5 // pred_fallthru
        _
    $region6: #{tpu_custom_call.1} parent=1 // loop_footer
      %s19 = sadd.s32 1, %s15
    $region7: #{tpu_custom_call.1} parent=1 // loop_footer_branch
      %14 = sbr.rel target = $region3
    $region8: #{tpu_custom_call.1} parent=1 // loop_exit
      _
    %329 = vsyncpa [#allocation3], 1
    %s330 = scalar_lea.sflag [#allocation3], 1
    %331 = vsyncpa %s330, 1
    %332 = vsyncpa [#allocation4], 1
    %s333 = scalar_lea.sflag [#allocation4], 1
    %334 = vsyncpa %s333, 1

</llo_original>
